<compile_context>
chip_gen: v7x
topology: tpu7x:2x2x1
jax: 0.10.0
libtpu: 0.0.40
codegen_flags: <defaults>
</compile_context>

<pallas_src>
import functools

import jax
import jax.numpy as jnp
import numpy as np
from jax.experimental import pallas as pl
from jax.experimental.pallas import tpu as pltpu

_N_STATS = 6  # [sum_t, sum_p, sum_p*p, sum_p*t, sum_log_q, sum_t*log_q]


def _round_up(x, m):
    return ((x + m - 1) // m) * m


def _vmem_capacity_bytes():
    try:
        cap = getattr(pltpu.get_tpu_info(), "vmem_capacity_bytes", None)
        if cap:
            return int(cap)
    except Exception:
        pass
    return 64 * 1024 * 1024  # conservative fallback (v7x physical VMEM)


def _stats_kernel(p_ref, t_ref, out_ref, *, tb, chunk, ks, r0,
                  gb_mask_start, needs_mask):
    """Accumulates six per-lane (8,128) partial sums into the output block.

    out_ref block (1, 1, 6, 8, 128) is resident across the k axis (accumulator
    pattern): zeroed at k == 0, written every step, auto written back to HBM
    when the (i, s) block index changes.
    """
    k = pl.program_id(2)
    gb = pl.program_id(1) * ks + k          # global block index along the R axis

    @pl.when(k == 0)
    def _init():
        out_ref[...] = jnp.zeros_like(out_ref)

    n_chunks = tb // chunk

    def fold(x):
        # (chunk, 128) -> (8, 128) via pure VPU adds (no XLU cross-lane work).
        return jnp.sum(x.reshape(chunk // 8, 8, 128), axis=0)

    def make_body(masked, row_base):
        def body(c, carry):
            a_t, a_p, a_pp, a_pt, a_lq, a_tlq = carry
            base = c * chunk
            if not isinstance(base, int):
                base = pl.multiple_of(base, chunk)
            p = p_ref[0, pl.ds(base, chunk), :].astype(jnp.float32)
            t = t_ref[0, pl.ds(base, chunk), :].astype(jnp.float32)
            if masked:
                # Mask p/t BEFORE the log: masked elements become (p=0, t=0)
                # -> q = 1, log q = 0, i.e. exactly zero contribution.
                valid = (row_base + base) < r0
                p = jnp.where(valid, p, 0.0)
                t = jnp.where(valid, t, 0.0)
            q = jnp.where(t == 1.0, p, 1.0 - p)   # t==1 -> p ; t==0 -> 1-p
            logq = jnp.log(q)                     # single transcendental / element
            return (a_t + fold(t),
                    a_p + fold(p),
                    a_pp + fold(p * p),
                    a_pt + fold(p * t),
                    a_lq + fold(logq),
                    a_tlq + fold(t * logq))
        return body

    def process(masked):
        row_base = None
        if masked:
            # Hoisted out of the chunk loop (JAX does not CSE broadcasts).
            row = jax.lax.broadcasted_iota(jnp.int32, (chunk, 128), 0)
            row_base = gb * tb + row
        body = make_body(masked, row_base)
        # Partial sums live in vregs as the loop carry; only 6 loads + 6
        # stores of the VMEM accumulator per grid step, independent of tb.
        carry = tuple(out_ref[0, 0, s] for s in range(_N_STATS))
        if n_chunks <= 4:
            for c in range(n_chunks):          # static indices -> static slices
                carry = body(c, carry)
        else:
            carry = jax.lax.fori_loop(0, n_chunks, body, carry, unroll=4)
        for s in range(_N_STATS):
            out_ref[0, 0, s] = carry[s]

    if not needs_mask:
        process(False)
    elif gb_mask_start == 0:
        process(True)
    else:
        @pl.when(gb < gb_mask_start)
        def _full_blocks():
            process(False)

        @pl.when(gb >= gb_mask_start)
        def _tail_block():
            process(True)


def _compute_stats(p2, t2):
    """Per-row statistics (N, 6) float32 for binary targets."""
    n, l = p2.shape
    isz_p = jnp.dtype(p2.dtype).itemsize
    isz_t = jnp.dtype(t2.dtype).itemsize

    # Pad only to the next lane multiple (needed for the no-copy reshape);
    # everything else ragged is handled by the in-kernel mask, never jnp.pad.
    l128 = _round_up(l, 128)
    if l128 != l:
        # Zero padding contributes exactly 0 to every statistic.
        p2 = jnp.pad(p2, ((0, 0), (0, l128 - l)))
        t2 = jnp.pad(t2, ((0, 0), (0, l128 - l)))
    r0 = l128 // 128
    p3 = p2.reshape(n, r0, 128)
    t3 = t2.reshape(n, r0, 128)

    # ---- generation-aware tile size (2 inputs x 2 pipeline buffers) --------
    vmem_cap = _vmem_capacity_bytes()
    in_budget = min(24 * 1024 * 1024, vmem_cap // 3)
    tb_budget = in_budget // (2 * 128 * (isz_p + isz_t))
    tb_budget = max(32, min(16384, (tb_budget // 32) * 32))

    if r0 % 8 == 0 and r0 <= 64:
        tb = r0                               # tiny case: full-dim block, no mask
    else:
        tb = min(tb_budget, _round_up(r0, 32))
    k_steps = pl.cdiv(r0, tb)

    # ---- optional 2nd-TensorCore split of the reduction (v7x, small batch) --
    s_split = 1
    if n % 2 == 1 and k_steps >= 2:
        if k_steps % 2 == 1:
            # Try to re-tile so the reduction splits evenly (no over-range blocks).
            tb_try = _round_up(pl.cdiv(r0, k_steps + 1), 32)
            if tb_try >= 32 and pl.cdiv(r0, tb_try) % 2 == 0:
                tb = tb_try
                k_steps = pl.cdiv(r0, tb)
        if k_steps % 2 == 0:
            s_split = 2
    ks = k_steps // s_split

    chunk = 32 if tb % 32 == 0 else tb        # 32-aligned slices work for any dtype
    needs_mask = (s_split * ks * tb != r0)
    gb_mask_start = r0 // tb                  # first block that needs masking

    kernel = functools.partial(
        _stats_kernel, tb=tb, chunk=chunk, ks=ks, r0=r0,
        gb_mask_start=gb_mask_start, needs_mask=needs_mask)

    elems = n * s_split * ks * tb * 128
    cost = pl.CostEstimate(
        flops=11 * elems,
        transcendentals=elems,
        bytes_accessed=n * r0 * 128 * (isz_p + isz_t)
        + n * s_split * _N_STATS * 8 * 128 * 4)

    vmem_limit = max(32 * 1024 * 1024,
                     min(int(0.75 * vmem_cap), 96 * 1024 * 1024))

    # NOTE: pipeline_mode=pl.Buffered(3) on the input specs is a further v7x
    # knob once tb is raised; left at the default double-buffering here.
    stats5 = pl.pallas_call(
        kernel,
        out_shape=jax.ShapeDtypeStruct((n, s_split, _N_STATS, 8, 128),
                                       jnp.float32),
        grid_spec=pltpu.PrefetchScalarGridSpec(
            num_scalar_prefetch=0,
            grid=(n, s_split, ks),
            in_specs=[
                pl.BlockSpec((1, tb, 128), lambda i, s, k: (i, s * ks + k, 0)),
                pl.BlockSpec((1, tb, 128), lambda i, s, k: (i, s * ks + k, 0)),
            ],
            out_specs=pl.BlockSpec((1, 1, _N_STATS, 8, 128),
                                   lambda i, s, k: (i, s, 0, 0, 0)),
        ),
        compiler_params=pltpu.CompilerParams(
            dimension_semantics=("parallel", "parallel", "arbitrary"),
            vmem_limit_bytes=vmem_limit),
        cost_estimate=cost,
    )(p3, t3)

    # Lane/sublane reduction finished in the JAX epilogue (item 6 of review).
    return jnp.sum(stats5, axis=(1, 3, 4))    # (N, 6)


def domi_binary_dice_loss(predict, target, smooth=1.0):
    """Pallas implementation of DomiBinaryDiceLoss(weighted=True).forward."""
    n = predict.shape[0]
    # No dtype cast here: inputs stream in native dtype, upcast in-kernel.
    p2 = predict.reshape(n, -1)
    t2 = target.reshape(n, -1)
    l = p2.shape[1]

    stats = _compute_stats(p2, t2)            # (N, 6) float32
    sum_t, sum_p, sum_pp, sum_pt, sum_logq, sum_t_logq = (
        stats[:, 0], stats[:, 1], stats[:, 2], stats[:, 3], stats[:, 4], stats[:, 5])

    # ---- weighted_BCE epilogue (binary-target identities) ----
    total = jnp.float32(n * l)
    cnt1 = jnp.sum(sum_t)                     # == (target == 1).sum() for binary target
    cnt0 = total - cnt1                       # == (target == 0).sum() for binary target
    w0 = jnp.where(cnt0 < 0.5, 0.0, total / (cnt0 * 2.0))
    w1 = jnp.where(cnt1 < 0.5, 0.0, total / (cnt1 * 2.0))
    s_tlogp = jnp.sum(sum_t_logq)             # sum(t * log p)
    s_1mt_log1mp = jnp.sum(sum_logq) - s_tlogp  # sum((1-t) * log(1-p))
    bce = -(w1 * s_tlogp + w0 * s_1mt_log1mp) / total

    # ---- 2-class dice epilogue ----
    lf = jnp.float32(l)
    inter1 = sum_pt
    denom1 = sum_pp + sum_t                              # t*t == t (binary)
    inter0 = lf - sum_p - sum_t + sum_pt                 # sum((1-p)*(1-t))
    denom0 = 2.0 * lf - 2.0 * sum_p + sum_pp - sum_t     # sum((1-p)^2 + (1-t)^2)
    dice1 = jnp.mean(1.0 - (2.0 * inter1 + smooth) / (denom1 + smooth))
    dice0 = jnp.mean(1.0 - (2.0 * inter0 + smooth) / (denom0 + smooth))
    dice = 0.5 * (dice0 + dice1)

    return bce + dice


def _reference_loss(predict, target, smooth=1.0):
    """Pure-JAX reference matching the PyTorch semantics."""
    n = predict.shape[0]
    p = predict.reshape(n, -1).astype(jnp.float32)
    t = target.reshape(n, -1).astype(jnp.float32)
    total = p.size
    num0 = jnp.sum(t == 0.0)
    num1 = jnp.sum(t == 1.0)
    w0 = jnp.where(num0 == 0, 0.0, total / (num0 * 2.0))
    w1 = jnp.where(num1 == 0, 0.0, total / (num1 * 2.0))
    bce = jnp.mean(-(w1 * (t * jnp.log(p)) + w0 * ((1.0 - t) * jnp.log(1.0 - p))))

    def dice(pp, tt):
        num = 2.0 * jnp.sum(pp * tt, axis=1) + smooth
        den = jnp.sum(pp * pp + tt * tt, axis=1) + smooth
        return jnp.mean(1.0 - num / den)

    return bce + 0.5 * (dice(p, t) + dice(1.0 - p, 1.0 - t))


if __name__ == "__main__":
    key = jax.random.PRNGKey(0)
    k1, k2 = jax.random.split(key)

    N, C, H, W = 2, 4, 16, 16
    # predict: probabilities in (0, 1); target: binary map streamed as int8
    # (the kernel upcasts in VMEM; no f32 copy of the label map in HBM).
    predict = jax.nn.sigmoid(jax.random.normal(k1, (N, C, H, W), jnp.float32))
    target = (jax.random.uniform(k2, (N, C, H, W)) > 0.5).astype(jnp.int8)

    loss = jax.block_until_ready(jax.jit(domi_binary_dice_loss)(predict, target))
    ref = jax.block_until_ready(_reference_loss(predict, target))

    assert np.isfinite(np.asarray(loss)), "non-finite loss"
    np.testing.assert_allclose(np.asarray(loss), np.asarray(ref),
                               rtol=1e-4, atol=1e-5)
    print("KERNEL_OK")
</pallas_src>

<mosaic_0001>
module attributes {stable_mosaic.version = 11 : i64} {
  func.func @_stats_kernel(%arg0: i32, %arg1: i32, %arg2: i32, %arg3: memref<1x8x128xf32, #tpu.memory_space<vmem>>, %arg4: memref<1x8x128xi8, #tpu.memory_space<vmem>>, %arg5: memref<1x1x6x8x128xf32, #tpu.memory_space<vmem>>) attributes {dimension_semantics = [#tpu.dimension_semantics<parallel>, #tpu.dimension_semantics<parallel>, #tpu.dimension_semantics<arbitrary>], iteration_bounds = array<i64: 2, 1, 1>, scalar_prefetch = 0 : i64, scratch_operands = 0 : i64, tpu.core_type = #tpu.core_type<tc>, window_params = [{transform_indices = @transform_0, window_bounds = array<i64: 1, 8, 128>}, {transform_indices = @transform_1, window_bounds = array<i64: 1, 8, 128>}, {transform_indices = @transform_2, window_bounds = array<i64: 1, 1, 6, 8, 128>}]} {
    %c0_i32 = arith.constant 0 : i32
    %0 = arith.cmpi eq, %arg2, %c0_i32 : i32
    %1 = arith.extui %0 : i1 to i32
    %c0_i32_0 = arith.constant 0 : i32
    %2 = arith.cmpi ne, %1, %c0_i32_0 : i32
    scf.if %2 {
      %cst_68 = arith.constant 0.000000e+00 : f32
      %65 = vector.broadcast %cst_68 : f32 to vector<1x1x6x8x128xf32>
      %c0_69 = arith.constant 0 : index
      %c0_70 = arith.constant 0 : index
      %c0_71 = arith.constant 0 : index
      %c0_72 = arith.constant 0 : index
      %c0_73 = arith.constant 0 : index
      %66 = vector.load %arg5[%c0_69, %c0_70, %c0_71, %c0_72, %c0_73] : memref<1x1x6x8x128xf32, #tpu.memory_space<vmem>>, vector<1x1x6x8x128xf32>
      tpu.vector_store %arg5[%c0_69, %c0_70, %c0_71, %c0_72, %c0_73], %65 {strides = array<i32>} : memref<1x1x6x8x128xf32, #tpu.memory_space<vmem>>, vector<1x1x6x8x128xf32>,
    } else {
    }
    %c0 = arith.constant 0 : index
    %c0_1 = arith.constant 0 : index
    %c0_2 = arith.constant 0 : index
    %c0_3 = arith.constant 0 : index
    %c0_4 = arith.constant 0 : index
    %3 = vector.load %arg5[%c0, %c0_1, %c0_2, %c0_3, %c0_4] : memref<1x1x6x8x128xf32, #tpu.memory_space<vmem>>, vector<1x1x1x8x128xf32>
    %4 = vector.shape_cast %3 : vector<1x1x1x8x128xf32> to vector<8x128xf32>
    %c0_5 = arith.constant 0 : index
    %c0_6 = arith.constant 0 : index
    %c1 = arith.constant 1 : index
    %c0_7 = arith.constant 0 : index
    %c0_8 = arith.constant 0 : index
    %5 = vector.load %arg5[%c0_5, %c0_6, %c1, %c0_7, %c0_8] : memref<1x1x6x8x128xf32, #tpu.memory_space<vmem>>, vector<1x1x1x8x128xf32>
    %6 = vector.shape_cast %5 : vector<1x1x1x8x128xf32> to vector<8x128xf32>
    %c0_9 = arith.constant 0 : index
    %c0_10 = arith.constant 0 : index
    %c2 = arith.constant 2 : index
    %c0_11 = arith.constant 0 : index
    %c0_12 = arith.constant 0 : index
    %7 = vector.load %arg5[%c0_9, %c0_10, %c2, %c0_11, %c0_12] : memref<1x1x6x8x128xf32, #tpu.memory_space<vmem>>, vector<1x1x1x8x128xf32>
    %8 = vector.shape_cast %7 : vector<1x1x1x8x128xf32> to vector<8x128xf32>
    %c0_13 = arith.constant 0 : index
    %c0_14 = arith.constant 0 : index
    %c3 = arith.constant 3 : index
    %c0_15 = arith.constant 0 : index
    %c0_16 = arith.constant 0 : index
    %9 = vector.load %arg5[%c0_13, %c0_14, %c3, %c0_15, %c0_16] : memref<1x1x6x8x128xf32, #tpu.memory_space<vmem>>, vector<1x1x1x8x128xf32>
    %10 = vector.shape_cast %9 : vector<1x1x1x8x128xf32> to vector<8x128xf32>
    %c0_17 = arith.constant 0 : index
    %c0_18 = arith.constant 0 : index
    %c4 = arith.constant 4 : index
    %c0_19 = arith.constant 0 : index
    %c0_20 = arith.constant 0 : index
    %11 = vector.load %arg5[%c0_17, %c0_18, %c4, %c0_19, %c0_20] : memref<1x1x6x8x128xf32, #tpu.memory_space<vmem>>, vector<1x1x1x8x128xf32>
    %12 = vector.shape_cast %11 : vector<1x1x1x8x128xf32> to vector<8x128xf32>
    %c0_21 = arith.constant 0 : index
    %c0_22 = arith.constant 0 : index
    %c5 = arith.constant 5 : index
    %c0_23 = arith.constant 0 : index
    %c0_24 = arith.constant 0 : index
    %13 = vector.load %arg5[%c0_21, %c0_22, %c5, %c0_23, %c0_24] : memref<1x1x6x8x128xf32, #tpu.memory_space<vmem>>, vector<1x1x1x8x128xf32>
    %14 = vector.shape_cast %13 : vector<1x1x1x8x128xf32> to vector<8x128xf32>
    %c0_25 = arith.constant 0 : index
    %c0_26 = arith.constant 0 : index
    %c0_27 = arith.constant 0 : index
    %15 = vector.load %arg3[%c0_25, %c0_26, %c0_27] : memref<1x8x128xf32, #tpu.memory_space<vmem>>, vector<1x8x128xf32>
    %16 = vector.shape_cast %15 : vector<1x8x128xf32> to vector<8x128xf32>
    %c0_28 = arith.constant 0 : index
    %c0_29 = arith.constant 0 : index
    %c0_30 = arith.constant 0 : index
    %17 = vector.load %arg4[%c0_28, %c0_29, %c0_30] : memref<1x8x128xi8, #tpu.memory_space<vmem>>, vector<1x8x128xi8>
    %18 = vector.shape_cast %17 : vector<1x8x128xi8> to vector<8x128xi8>
    %19 = arith.sitofp %18 : vector<8x128xi8> to vector<8x128xf32>
    %cst = arith.constant 1.000000e+00 : f32
    %20 = vector.broadcast %cst : f32 to vector<8x128xf32>
    %21 = arith.cmpf oeq, %19, %20 : vector<8x128xf32>
    %cst_31 = arith.constant 1.000000e+00 : f32
    %22 = vector.broadcast %cst_31 : f32 to vector<8x128xf32>
    %23 = arith.subf %22, %16 : vector<8x128xf32>
    %24 = arith.select %21, %16, %23 : vector<8x128xi1>, vector<8x128xf32>
    %25 = math.log %24 : vector<8x128xf32>
    %26 = vector.shape_cast %19 : vector<8x128xf32> to vector<1x8x128xf32>
    %cst_32 = arith.constant dense<0.000000e+00> : vector<8x128xf32>
    %27 = vector.multi_reduction <add>, %26, %cst_32 [0] : vector<1x8x128xf32> to vector<8x128xf32>
    %28 = arith.addf %4, %27 : vector<8x128xf32>
    %29 = vector.shape_cast %16 : vector<8x128xf32> to vector<1x8x128xf32>
    %cst_33 = arith.constant dense<0.000000e+00> : vector<8x128xf32>
    %30 = vector.multi_reduction <add>, %29, %cst_33 [0] : vector<1x8x128xf32> to vector<8x128xf32>
    %31 = arith.addf %6, %30 : vector<8x128xf32>
    %32 = arith.mulf %16, %16 : vector<8x128xf32>
    %33 = vector.shape_cast %32 : vector<8x128xf32> to vector<1x8x128xf32>
    %cst_34 = arith.constant dense<0.000000e+00> : vector<8x128xf32>
    %34 = vector.multi_reduction <add>, %33, %cst_34 [0] : vector<1x8x128xf32> to vector<8x128xf32>
    %35 = arith.addf %8, %34 : vector<8x128xf32>
    %36 = arith.mulf %16, %19 : vector<8x128xf32>
    %37 = vector.shape_cast %36 : vector<8x128xf32> to vector<1x8x128xf32>
    %cst_35 = arith.constant dense<0.000000e+00> : vector<8x128xf32>
    %38 = vector.multi_reduction <add>, %37, %cst_35 [0] : vector<1x8x128xf32> to vector<8x128xf32>
    %39 = arith.addf %10, %38 : vector<8x128xf32>
    %40 = vector.shape_cast %25 : vector<8x128xf32> to vector<1x8x128xf32>
    %cst_36 = arith.constant dense<0.000000e+00> : vector<8x128xf32>
    %41 = vector.multi_reduction <add>, %40, %cst_36 [0] : vector<1x8x128xf32> to vector<8x128xf32>
    %42 = arith.addf %12, %41 : vector<8x128xf32>
    %43 = arith.mulf %19, %25 : vector<8x128xf32>
    %44 = vector.shape_cast %43 : vector<8x128xf32> to vector<1x8x128xf32>
    %cst_37 = arith.constant dense<0.000000e+00> : vector<8x128xf32>
    %45 = vector.multi_reduction <add>, %44, %cst_37 [0] : vector<1x8x128xf32> to vector<8x128xf32>
    %46 = arith.addf %14, %45 : vector<8x128xf32>
    %c0_38 = arith.constant 0 : index
    %c0_39 = arith.constant 0 : index
    %c0_40 = arith.constant 0 : index
    %c0_41 = arith.constant 0 : index
    %c0_42 = arith.constant 0 : index
    %47 = vector.load %arg5[%c0_38, %c0_39, %c0_40, %c0_41, %c0_42] : memref<1x1x6x8x128xf32, #tpu.memory_space<vmem>>, vector<1x1x1x8x128xf32>
    %48 = vector.shape_cast %47 : vector<1x1x1x8x128xf32> to vector<8x128xf32>
    %49 = vector.shape_cast %28 : vector<8x128xf32> to vector<1x1x1x8x128xf32>
    tpu.vector_store %arg5[%c0_38, %c0_39, %c0_40, %c0_41, %c0_42], %49 {strides = array<i32>} : memref<1x1x6x8x128xf32, #tpu.memory_space<vmem>>, vector<1x1x1x8x128xf32>,
    %c0_43 = arith.constant 0 : index
    %c0_44 = arith.constant 0 : index
    %c1_45 = arith.constant 1 : index
    %c0_46 = arith.constant 0 : index
    %c0_47 = arith.constant 0 : index
    %50 = vector.load %arg5[%c0_43, %c0_44, %c1_45, %c0_46, %c0_47] : memref<1x1x6x8x128xf32, #tpu.memory_space<vmem>>, vector<1x1x1x8x128xf32>
    %51 = vector.shape_cast %50 : vector<1x1x1x8x128xf32> to vector<8x128xf32>
    %52 = vector.shape_cast %31 : vector<8x128xf32> to vector<1x1x1x8x128xf32>
    tpu.vector_store %arg5[%c0_43, %c0_44, %c1_45, %c0_46, %c0_47], %52 {strides = array<i32>} : memref<1x1x6x8x128xf32, #tpu.memory_space<vmem>>, vector<1x1x1x8x128xf32>,
    %c0_48 = arith.constant 0 : index
    %c0_49 = arith.constant 0 : index
    %c2_50 = arith.constant 2 : index
    %c0_51 = arith.constant 0 : index
    %c0_52 = arith.constant 0 : index
    %53 = vector.load %arg5[%c0_48, %c0_49, %c2_50, %c0_51, %c0_52] : memref<1x1x6x8x128xf32, #tpu.memory_space<vmem>>, vector<1x1x1x8x128xf32>
    %54 = vector.shape_cast %53 : vector<1x1x1x8x128xf32> to vector<8x128xf32>
    %55 = vector.shape_cast %35 : vector<8x128xf32> to vector<1x1x1x8x128xf32>
    tpu.vector_store %arg5[%c0_48, %c0_49, %c2_50, %c0_51, %c0_52], %55 {strides = array<i32>} : memref<1x1x6x8x128xf32, #tpu.memory_space<vmem>>, vector<1x1x1x8x128xf32>,
    %c0_53 = arith.constant 0 : index
    %c0_54 = arith.constant 0 : index
    %c3_55 = arith.constant 3 : index
    %c0_56 = arith.constant 0 : index
    %c0_57 = arith.constant 0 : index
    %56 = vector.load %arg5[%c0_53, %c0_54, %c3_55, %c0_56, %c0_57] : memref<1x1x6x8x128xf32, #tpu.memory_space<vmem>>, vector<1x1x1x8x128xf32>
    %57 = vector.shape_cast %56 : vector<1x1x1x8x128xf32> to vector<8x128xf32>
    %58 = vector.shape_cast %39 : vector<8x128xf32> to vector<1x1x1x8x128xf32>
    tpu.vector_store %arg5[%c0_53, %c0_54, %c3_55, %c0_56, %c0_57], %58 {strides = array<i32>} : memref<1x1x6x8x128xf32, #tpu.memory_space<vmem>>, vector<1x1x1x8x128xf32>,
    %c0_58 = arith.constant 0 : index
    %c0_59 = arith.constant 0 : index
    %c4_60 = arith.constant 4 : index
    %c0_61 = arith.constant 0 : index
    %c0_62 = arith.constant 0 : index
    %59 = vector.load %arg5[%c0_58, %c0_59, %c4_60, %c0_61, %c0_62] : memref<1x1x6x8x128xf32, #tpu.memory_space<vmem>>, vector<1x1x1x8x128xf32>
    %60 = vector.shape_cast %59 : vector<1x1x1x8x128xf32> to vector<8x128xf32>
    %61 = vector.shape_cast %42 : vector<8x128xf32> to vector<1x1x1x8x128xf32>
    tpu.vector_store %arg5[%c0_58, %c0_59, %c4_60, %c0_61, %c0_62], %61 {strides = array<i32>} : memref<1x1x6x8x128xf32, #tpu.memory_space<vmem>>, vector<1x1x1x8x128xf32>,
    %c0_63 = arith.constant 0 : index
    %c0_64 = arith.constant 0 : index
    %c5_65 = arith.constant 5 : index
    %c0_66 = arith.constant 0 : index
    %c0_67 = arith.constant 0 : index
    %62 = vector.load %arg5[%c0_63, %c0_64, %c5_65, %c0_66, %c0_67] : memref<1x1x6x8x128xf32, #tpu.memory_space<vmem>>, vector<1x1x1x8x128xf32>
    %63 = vector.shape_cast %62 : vector<1x1x1x8x128xf32> to vector<8x128xf32>
    %64 = vector.shape_cast %46 : vector<8x128xf32> to vector<1x1x1x8x128xf32>
    tpu.vector_store %arg5[%c0_63, %c0_64, %c5_65, %c0_66, %c0_67], %64 {strides = array<i32>} : memref<1x1x6x8x128xf32, #tpu.memory_space<vmem>>, vector<1x1x1x8x128xf32>,
    return
  }
  func.func @transform_0(%arg0: i32, %arg1: i32, %arg2: i32) -> (i32, i32, i32) {
    %c1_i32 = arith.constant 1 : i32
    %0 = arith.muli %arg1, %c1_i32 : i32
    %1 = arith.addi %0, %arg2 : i32
    %c0_i32 = arith.constant 0 : i32
    %c0_i32_0 = arith.constant 0 : i32
    return %arg0, %1, %c0_i32 : i32, i32, i32
  }
  func.func @transform_1(%arg0: i32, %arg1: i32, %arg2: i32) -> (i32, i32, i32) {
    %c1_i32 = arith.constant 1 : i32
    %0 = arith.muli %arg1, %c1_i32 : i32
    %1 = arith.addi %0, %arg2 : i32
    %c0_i32 = arith.constant 0 : i32
    %c0_i32_0 = arith.constant 0 : i32
    return %arg0, %1, %c0_i32 : i32, i32, i32
  }
  func.func @transform_2(%arg0: i32, %arg1: i32, %arg2: i32) -> (i32, i32, i32, i32, i32) {
    %c0_i32 = arith.constant 0 : i32
    %c0_i32_0 = arith.constant 0 : i32
    %c0_i32_1 = arith.constant 0 : i32
    %c0_i32_2 = arith.constant 0 : i32
    return %arg0, %arg1, %c0_i32, %c0_i32_0, %c0_i32_1 : i32, i32, i32, i32, i32
  }
}

</mosaic_0001>

<llo_original>
// kernel: domi_binary_dice_loss.1
$region0: #{domi_binary_dice_loss.1}
  #allocation0 [shape = 'u32[]', space=smem, size = 0x4, offset = 0x4, fixed_abs, tag = 'smem constant byte address 0x4 - core index']
  #allocation1 [shape = 'u32[144,128]{1,0:T(1,128)}', space=vmem, size = 0x12000, scoped, tag = 'internal scratch']
  %s0 = inlined_call_operand.vmem [shape: f32[2,8,128], index: 0, kind: input, shape index: {}]
  %s1 = inlined_call_operand.vmem [shape: s8[2,8,128], index: 1, kind: input, shape index: {}]
  %s2 = inlined_call_operand.vmem [shape: f32[2,1,6,8,128], index: 2, kind: output, shape index: {}]
  %s3 = sld [smem:[#allocation0]]
  $region45: #{domi_binary_dice_loss.1} parent=0
    _
  %s5 = ssub.s32 1, %s3
  %s6 = scalar_select 0, %s5, %s3
  loop: start=0, step=1, limit=4
  $region2: #{domi_binary_dice_loss.1} parent=0 // loop_pre_header
    _
  $region3: #{domi_binary_dice_loss.1} parent=0 // loop_header
    %s8 = sphi 0, %s12
    %p9 = scmp.ge.s32.totalorder %s8, 4
    %s15 = sphi 0, %s34
    %s16 = sphi 0, %s30
    %s17 = sphi 0, %s26
    %s18 = sphi 0, %s15
    %s19 = sphi 0, %s16
    %s20 = sphi 0, %s17
    %s21 = sphi 0, %s18
    %s22 = sphi 0, %s19
    %s23 = sphi 0, %s20
    %s41 = sphi 0, %s43
    %s44 = sphi 0, %s41
    %s45 = sphi 0, %s44
    %s61 = sphi 0, %s45
    %s71 = sphi 0, %s73
    %s74 = sphi 0, %s71
    %s75 = sphi 0, %s74
    %s91 = sphi 0, %s75
    %s99 = sphi 0, %s101
    %s102 = sphi 0, %s99
    %s103 = sphi 0, %s102
    %s119 = sphi 0, %s103
  $region4: #{domi_binary_dice_loss.1} parent=0 // loop_header_branch
    %11 = sbr.rel (%p9) target = $region8
  $region5: #{domi_binary_dice_loss.1} parent=0 // loop_body
    %s13 = ssub.s32 %s8, 1
    %s14 = ssub.s32 %s8, 2
    %s24 = sadd.s32 1, %s17
    %p25 = scmp.ge.s32.totalorder %s24, 1
    %s26 = scalar_select %p25, 0, %s24
    %s27 = sadd.s32 1, %s16
    %s28 = scalar_select %p25, %s27, %s16
    %p29 = scmp.ge.s32.totalorder %s28, 1
    %s30 = scalar_select %p29, 0, %s28
    %s31 = sadd.s32 1, %s15
    %s32 = scalar_select %p29, %s31, %s15
    %p33 = scmp.ge.s32.totalorder %s32, 2
    %s34 = scalar_select %p33, 0, %s32
    %s35 = sadd.s32 %s16, %s17
    %s36 = sadd.s32 %s30, %s26
    %s37 = ssub.s32 %s15, %s34
    %s38 = ssub.s32 %s35, %s36
    %s39 = sor.u32 %s37, %s38
    %p40 = scmp.eq.s32.totalorder %s39, 0
    %s42 = sadd.s32 %s41, 1
    %s43 = scalar_select %p40, %s41, %s42
    %p46 = pneg %p40
    %p47 = scmp.eq.s32.totalorder %s8, 1
    %p48 = por %p46, %p47
    %p49 = scmp.ne.s32.totalorder %s41, %s44
    %p50 = scmp.eq.s32.totalorder %s8, 0
    %p51 = por %p49, %p50
    %p52 = scmp.ne.s32.totalorder %s41, %s44
    %p53 = scmp.eq.s32.totalorder %s13, 1
    %p54 = por %p52, %p53
    %p55 = scmp.ne.s32.totalorder %s44, %s45
    %p56 = scmp.eq.s32.totalorder %s13, 0
    %p57 = por %p55, %p56
    %p58 = scmp.ne.s32.totalorder %s44, %s45
    %p59 = scmp.eq.s32.totalorder %s14, 1
    %p60 = por %p58, %p59
    %p62 = scmp.ne.s32.totalorder %s45, %s61
    %p63 = scmp.eq.s32.totalorder %s14, 0
    %p64 = por %p62, %p63
    %s65 = sadd.s32 %s16, %s17
    %s66 = sadd.s32 %s30, %s26
    %s67 = ssub.s32 %s15, %s34
    %s68 = ssub.s32 %s65, %s66
    %s69 = sor.u32 %s67, %s68
    %p70 = scmp.eq.s32.totalorder %s69, 0
    %s72 = sadd.s32 %s71, 1
    %s73 = scalar_select %p70, %s71, %s72
    %p76 = pneg %p70
    %p77 = scmp.eq.s32.totalorder %s8, 1
    %p78 = por %p76, %p77
    %p79 = scmp.ne.s32.totalorder %s71, %s74
    %p80 = scmp.eq.s32.totalorder %s8, 0
    %p81 = por %p79, %p80
    %p82 = scmp.ne.s32.totalorder %s71, %s74
    %p83 = scmp.eq.s32.totalorder %s13, 1
    %p84 = por %p82, %p83
    %p85 = scmp.ne.s32.totalorder %s74, %s75
    %p86 = scmp.eq.s32.totalorder %s13, 0
    %p87 = por %p85, %p86
    %p88 = scmp.ne.s32.totalorder %s74, %s75
    %p89 = scmp.eq.s32.totalorder %s14, 1
    %p90 = por %p88, %p89
    %p92 = scmp.ne.s32.totalorder %s75, %s91
    %p93 = scmp.eq.s32.totalorder %s14, 0
    %p94 = por %p92, %p93
    %s95 = ssub.s32 %s15, %s34
    %s96 = ssub.s32 %s16, %s30
    %s97 = sor.u32 %s95, %s96
    %p98 = scmp.eq.s32.totalorder %s97, 0
    %s100 = sadd.s32 %s99, 1
    %s101 = scalar_select %p98, %s99, %s100
    %p104 = pneg %p98
    %p105 = scmp.eq.s32.totalorder %s8, 1
    %p106 = por %p104, %p105
    %p107 = scmp.ne.s32.totalorder %s99, %s102
    %p108 = scmp.eq.s32.totalorder %s8, 0
    %p109 = por %p107, %p108
    %p110 = scmp.ne.s32.totalorder %s99, %s102
    %p111 = scmp.eq.s32.totalorder %s13, 1
    %p112 = por %p110, %p111
    %p113 = scmp.ne.s32.totalorder %s102, %s103
    %p114 = scmp.eq.s32.totalorder %s13, 0
    %p115 = por %p113, %p114
    %p116 = scmp.ne.s32.totalorder %s102, %s103
    %p117 = scmp.eq.s32.totalorder %s14, 1
    %p118 = por %p116, %p117
    %p120 = scmp.ne.s32.totalorder %s103, %s119
    %p121 = scmp.eq.s32.totalorder %s14, 0
    %p122 = por %p120, %p121
    %p123 = scmp.le.s32.totalorder 1, %s8
    %p124 = scmp.lt.s32.totalorder %s8, 3
    %p125 = pnand %p123, %p124
    %p126 = pneg %p125
    // Predicated region
    $region9: #{domi_binary_dice_loss.1} parent=5 // pred_check
      _
    $region10: #{domi_binary_dice_loss.1} parent=5 // pred_check_branch
      %128 = sbr.rel (%p125) target = $region12
    $region11: #{domi_binary_dice_loss.1} parent=5 // pred_region
      %s129 = ssub.s32 %s8, 1
    $region12: #{domi_binary_dice_loss.1} parent=5 // pred_fallthru
      _
    %p130 = scmp.lt.s32.totalorder %s8, 2
    // Predicated region
    $region13: #{domi_binary_dice_loss.1} parent=5 // pred_check
      %p131 = pneg %p130
    $region14: #{domi_binary_dice_loss.1} parent=5 // pred_check_branch
      %133 = sbr.rel (%p131) target = $region16
    $region15: #{domi_binary_dice_loss.1} parent=5 // pred_region
      // Predicated region
      $region17: #{domi_binary_dice_loss.1} parent=15 // pred_check
        %p134 = pneg %p51
      $region18: #{domi_binary_dice_loss.1} parent=15 // pred_check_branch
        %136 = sbr.rel (%p134) target = $region20
      $region19: #{domi_binary_dice_loss.1} parent=15 // pred_region
        %s137 = sadd.s32 %s16, %s17
        %p138 = scmp.lt.s32.totalorder %s15, 1
        %s139 = scalar_select %p138, %s15, 1
        %p140 = scmp.lt.s32.totalorder %s137, 0
        %s141 = scalar_select %p140, %s137, 0
        %s142 = sadd.s32 %s141, %s139
        %s143 = smul.addr %s142, 8
        %s144 = scalar_lea.vmem %s0, %s143
        %s145 = sadd.s32 %s16, %s17
      $region20: #{domi_binary_dice_loss.1} parent=15 // pred_fallthru
        _
      // Predicated region
      $region21: #{domi_binary_dice_loss.1} parent=15 // pred_check
        %p146 = pneg %p81
      $region22: #{domi_binary_dice_loss.1} parent=15 // pred_check_branch
        %148 = sbr.rel (%p146) target = $region24
      $region23: #{domi_binary_dice_loss.1} parent=15 // pred_region
        %s149 = sadd.s32 %s16, %s17
        %p150 = scmp.lt.s32.totalorder %s15, 1
        %s151 = scalar_select %p150, %s15, 1
        %p152 = scmp.lt.s32.totalorder %s149, 0
        %s153 = scalar_select %p152, %s149, 0
        %s154 = sadd.s32 %s153, %s151
        %s155 = smul.addr %s154, 2
        %s156 = scalar_lea.vmem %s1, %s155
        %s157 = sadd.s32 %s16, %s17
      $region24: #{domi_binary_dice_loss.1} parent=15 // pred_fallthru
        _
    $region16: #{domi_binary_dice_loss.1} parent=5 // pred_fallthru
      _
    %p158 = scmp.le.s32.totalorder 1, %s8
    %p159 = scmp.lt.s32.totalorder %s8, 3
    %p160 = pnand %p158, %p159
    %p161 = pneg %p160
    // Predicated region
    $region25: #{domi_binary_dice_loss.1} parent=5 // pred_check
      _
    $region26: #{domi_binary_dice_loss.1} parent=5 // pred_check_branch
      %163 = sbr.rel (%p160) target = $region28
    $region27: #{domi_binary_dice_loss.1} parent=5 // pred_region
      %s164 = ssub.s32 %s8, 1
      %s165 = sadd.s32 %s19, %s20
      %p166 = scmp.lt.s32.totalorder %s18, 1
      %s167 = scalar_select %p166, %s18, 1
      %p168 = scmp.lt.s32.totalorder %s165, 0
      %s169 = scalar_select %p168, %s165, 0
      %s170 = sadd.s32 %s169, %s167
      %s171 = smul.addr %s170, 8
      %s172 = scalar_lea.vmem %s0, %s171
      %p173 = pneg %p57
      %p174 = pneg %p54
      %s175 = sadd.s32 %s19, %s20
      %p176 = scmp.lt.s32.totalorder %s18, 1
      %s177 = scalar_select %p176, %s18, 1
      %p178 = scmp.lt.s32.totalorder %s175, 0
      %s179 = scalar_select %p178, %s175, 0
      %s180 = sadd.s32 %s179, %s177
      %s181 = smul.addr %s180, 2
      %s182 = scalar_lea.vmem %s1, %s181
      %p183 = pneg %p87
      %p184 = pneg %p84
      %p185 = pneg %p115
      %p186 = pneg %p112
      %p187 = scmp.lt.s32.totalorder %s18, 1
      %s188 = scalar_select %p187, %s18, 1
      %p189 = scmp.lt.s32.totalorder %s19, 0
      %s190 = scalar_select %p189, %s19, 0
      %s191 = smul.addr %s190, 6
      %s192 = smul.addr %s188, 6
      %s193 = sadd.s32 %s191, %s192
      %s194 = smul.addr %s193, 8
      %s195 = scalar_lea.vmem %s2, %s194
      %s196 = sadd.s32 %s19, %s20
      %p197 = scmp.lt.s32.totalorder %s18, 1
      %s198 = scalar_select %p197, %s18, 1
      %p199 = scmp.lt.s32.totalorder %s196, 0
      %s200 = scalar_select %p199, %s196, 0
      %s201 = sadd.s32 %s200, %s198
      %s202 = smul.addr %s201, 8
      %s203 = scalar_lea.vmem %s0, %s202
      %s204 = sadd.s32 %s19, %s20
      %s205 = sadd.s32 %s19, %s20
      %p206 = scmp.lt.s32.totalorder %s18, 1
      %s207 = scalar_select %p206, %s18, 1
      %p208 = scmp.lt.s32.totalorder %s205, 0
      %s209 = scalar_select %p208, %s205, 0
      %s210 = sadd.s32 %s209, %s207
      %s211 = smul.addr %s210, 2
      %s212 = scalar_lea.vmem %s1, %s211
      %s213 = sadd.s32 %s19, %s20
      %p214 = scmp.lt.s32.totalorder %s18, 1
      %s215 = scalar_select %p214, %s18, 1
      %p216 = scmp.lt.s32.totalorder %s19, 0
      %s217 = scalar_select %p216, %s19, 0
      %s218 = smul.addr %s217, 6
      %s219 = smul.addr %s215, 6
      %s220 = sadd.s32 %s218, %s219
      %s221 = smul.addr %s220, 8
      %s222 = scalar_lea.vmem %s2, %s221
      %p223 = scmp.eq.s32.totalorder %s20, 0
      // Predicated region
      $region29: #{domi_binary_dice_loss.1} parent=27 // pred_check
        %p224 = pneg %p223
      $region30: #{domi_binary_dice_loss.1} parent=27 // pred_check_branch
        %226 = sbr.rel (%p224) target = $region32
      $region31: #{domi_binary_dice_loss.1} parent=27 // pred_region
        %227 = vst [vmem:[%s222] sm:$0xff] 0.0
        %228 = vst [vmem:[%s222 + $0x8] sm:$0xff] 0.0
        %229 = vst [vmem:[%s222 + $0x10] sm:$0xff] 0.0
        %230 = vst [vmem:[%s222 + $0x18] sm:$0xff] 0.0
        %231 = vst [vmem:[%s222 + $0x20] sm:$0xff] 0.0
        %232 = vst [vmem:[%s222 + $0x28] sm:$0xff] 0.0
      $region32: #{domi_binary_dice_loss.1} parent=27 // pred_fallthru
        _
      %v233 = vld [vmem:[%s222] sm:$0xff]
      %s234 = scalar_lea.vmem %s222, 8
      %v235 = vld [vmem:[%s234] sm:$0xff]
      %s236 = scalar_lea.vmem %s222, 16
      %v237 = vld [vmem:[%s236] sm:$0xff]
      %s238 = scalar_lea.vmem %s222, 24
      %v239 = vld [vmem:[%s238] sm:$0xff]
      %s240 = scalar_lea.vmem %s222, 32
      %v241 = vld [vmem:[%s240] sm:$0xff]
      %s242 = scalar_lea.vmem %s222, 40
      %v243 = vld [vmem:[%s242] sm:$0xff]
      %v244 = vld [vmem:[%s203] sm:$0xff]
      %v245 = vld [vmem:[%s212] sm:$0x3]
      %v246 = vunpack.c.0.s8 %v245
      %v247 = vcvt.s32.f32 %v246
      %vm248 = vcmp.eq.f32.partialorder %v247, 1.0
      %v249 = vsub.f32 1.0, %v244
      %v250 = vsel %vm248, %v244, %v249
      %v251 = vlog2.pop %v250
      %v252 = vmul.f32 %v251, 0.6931472
      %v253 = vadd.f32 %v247, 0.0
      %v254 = vadd.f32 %v233, %v253
      %v255 = vadd.f32 %v244, 0.0
      %v256 = vadd.f32 %v235, %v255
      %v257 = vmul.f32 %v244, %v244
      %v258 = vadd.f32 %v257, 0.0
      %v259 = vadd.f32 %v237, %v258
      %v260 = vmul.f32 %v244, %v247
      %v261 = vadd.f32 %v260, 0.0
      %v262 = vadd.f32 %v239, %v261
      %v263 = vadd.f32 %v252, 0.0
      %v264 = vadd.f32 %v241, %v263
      %v265 = vmul.f32 %v247, %v252
      %v266 = vadd.f32 %v265, 0.0
      %v267 = vadd.f32 %v243, %v266
      %268 = vst [vmem:[%s222] sm:$0xff] %v254
      %269 = vst [vmem:[%s234] sm:$0xff] %v256
      %270 = vst [vmem:[%s236] sm:$0xff] %v259
      %271 = vst [vmem:[%s238] sm:$0xff] %v262
      %272 = vst [vmem:[%s240] sm:$0xff] %v264
      %273 = vst [vmem:[%s242] sm:$0xff] %v267
      %p274 = scmp.lt.s32.totalorder %s18, 1
      %s275 = scalar_select %p274, %s18, 1
      %p276 = scmp.lt.s32.totalorder %s19, 0
      %s277 = scalar_select %p276, %s19, 0
      %s278 = smul.addr %s277, 6
      %s279 = smul.addr %s275, 6
      %s280 = sadd.s32 %s278, %s279
      %s281 = smul.addr %s280, 8
      %s282 = scalar_lea.vmem %s2, %s281
      // Predicated region
      $region33: #{domi_binary_dice_loss.1} parent=27 // pred_check
        %p283 = pneg %p112
      $region34: #{domi_binary_dice_loss.1} parent=27 // pred_check_branch
        %285 = sbr.rel (%p283) target = $region36
      $region35: #{domi_binary_dice_loss.1} parent=27 // pred_region
        _
      $region36: #{domi_binary_dice_loss.1} parent=27 // pred_fallthru
        _
    $region28: #{domi_binary_dice_loss.1} parent=5 // pred_fallthru
      _
    %p286 = scmp.le.s32.totalorder 2, %s8
    // Predicated region
    $region37: #{domi_binary_dice_loss.1} parent=5 // pred_check
      %p287 = pneg %p286
    $region38: #{domi_binary_dice_loss.1} parent=5 // pred_check_branch
      %289 = sbr.rel (%p287) target = $region40
    $region39: #{domi_binary_dice_loss.1} parent=5 // pred_region
      %s290 = ssub.s32 %s8, 2
      // Predicated region
      $region41: #{domi_binary_dice_loss.1} parent=39 // pred_check
        %p291 = pneg %p118
      $region42: #{domi_binary_dice_loss.1} parent=39 // pred_check_branch
        %293 = sbr.rel (%p291) target = $region44
      $region43: #{domi_binary_dice_loss.1} parent=39 // pred_region
        %p294 = scmp.lt.s32.totalorder %s21, 1
        %s295 = scalar_select %p294, %s21, 1
        %p296 = scmp.lt.s32.totalorder %s22, 0
        %s297 = scalar_select %p296, %s22, 0
        %s298 = smul.addr %s297, 6
        %s299 = smul.addr %s295, 6
        %s300 = sadd.s32 %s298, %s299
        %s301 = smul.addr %s300, 8
        %s302 = scalar_lea.vmem %s2, %s301
      $region44: #{domi_binary_dice_loss.1} parent=39 // pred_fallthru
        _
    $region40: #{domi_binary_dice_loss.1} parent=5 // pred_fallthru
      _
  $region6: #{domi_binary_dice_loss.1} parent=0 // loop_footer
    %s12 = sadd.s32 1, %s8
  $region7: #{domi_binary_dice_loss.1} parent=0 // loop_footer_branch
    %7 = sbr.rel target = $region3
  $region8: #{domi_binary_dice_loss.1} parent=0 // loop_exit
    _

</llo_original>
